<compile_context>
chip_gen: v7x
topology: tpu7x:2x2x1
jax: 0.10.0
libtpu: 0.0.40
codegen_flags: <defaults>
</compile_context>

<pallas_src>
import functools

import jax
import jax.numpy as jnp
from jax.experimental import pallas as pl
from jax.experimental.pallas import tpu as pltpu

COEF_X = 1.0
COEF_TANH = 1.0

_WIDTH_CANDIDATES = (8192, 4096, 2048, 1024, 512, 256, 128)   # lane-dense widths
TARGET_BLOCK_BYTES = 8 << 20        # ~8 MiB per block (v7x-friendly amortization)
VMEM_LIMIT_BYTES = 48 << 20         # 4 x 8 MiB buffers + headroom; < 64 MiB (v7x)
SMALL_FAST_PATH_BYTES = 256 << 10   # below this, plain jnp wins (and fuses)


def _xtanh_kernel(x_ref, o_ref, *, coef_x, coef_tanh, compute_dtype):
    x = x_ref[...].astype(compute_dtype)
    t = jnp.tanh(x)                                     # EUP slot
    if coef_tanh != 1.0:                                # static Python checks:
        t = t * jnp.asarray(coef_tanh, compute_dtype)   # VPU mul elided if coef==1
    if coef_x == 0.0:
        y = t
    else:
        xs = x if coef_x == 1.0 else x * jnp.asarray(coef_x, compute_dtype)
        y = t + xs
    o_ref[...] = y.astype(o_ref.dtype)


def _xtanh_jnp(x, coef_x, coef_tanh):
    """Pure-jnp reference path (small inputs, traced coefs, misaligned sizes)."""
    xd = x.astype(jnp.float32) if jnp.dtype(x.dtype).itemsize < 4 else x
    y = coef_tanh * jnp.tanh(xd) + coef_x * xd
    return y.astype(x.dtype)


def _static_float(c):
    """Return c as a Python float if statically known, else None (tracer)."""
    if isinstance(c, (bool, int, float)):
        return float(c)
    try:
        return float(c)          # concrete numpy / jnp scalar
    except Exception:            # traced / abstract value
        return None


def _round_up(a, b):
    return ((a + b - 1) // b) * b


def xtanh_act(x, coef_x=COEF_X, coef_tanh=COEF_TANH):
    """Apply y = coef_tanh*tanh(x) + coef_x*x elementwise via a Pallas kernel."""
    orig_shape = x.shape
    dtype = x.dtype
    n = x.size
    if n == 0:
        return x

    cx = _static_float(coef_x)
    ct = _static_float(coef_tanh)
    itemsize = jnp.dtype(dtype).itemsize

    # Fast / fallback paths: traced coefficients, tiny tensors, or flat sizes
    # not divisible by a full lane width (plain XLA is already at the HBM
    # roofline there; pad/slice/concat plumbing would cost an extra HBM pass).
    if cx is None or ct is None or n * itemsize <= SMALL_FAST_PATH_BYTES:
        return _xtanh_jnp(x, coef_x, coef_tanh)
    width = next((w for w in _WIDTH_CANDIDATES if n % w == 0), None)
    if width is None:
        return _xtanh_jnp(x, cx, ct)

    # --- Pallas path: zero-copy (rows, width) lane-dense slab --------------
    # Sublane packing: 8 rows for 32-bit, 16 for 16-bit, 32 for 8-bit dtypes.
    sublane = 8 * max(1, 4 // itemsize)
    rows = n // width
    target_rows = max(sublane, TARGET_BLOCK_BYTES // (width * itemsize))

    num_blocks = pl.cdiv(rows, target_rows)
    if rows >= 2 * sublane:
        # >=2 blocks and an even count so both v7x TensorCores get work.
        num_blocks = max(2, num_blocks)
        num_blocks += num_blocks % 2
    tile = _round_up(pl.cdiv(rows, num_blocks), sublane)
    grid = pl.cdiv(rows, tile)
    # If tile does not divide rows exactly, the last block is ragged: Pallas
    # pads the out-of-bounds reads and masks the out-of-bounds writes, so no
    # wrapper-side padding or slicing is needed.

    x2d = x.reshape(rows, width)   # free: contiguous bitcast

    compute_dtype = jnp.float32 if itemsize < 4 else dtype
    kernel = functools.partial(
        _xtanh_kernel, coef_x=cx, coef_tanh=ct, compute_dtype=compute_dtype
    )

    out2d = pl.pallas_call(
        kernel,
        out_shape=jax.ShapeDtypeStruct((rows, width), dtype),
        grid_spec=pltpu.PrefetchScalarGridSpec(
            num_scalar_prefetch=0,
            grid=(grid,),
            in_specs=[pl.BlockSpec((tile, width), lambda i: (i, 0))],
            out_specs=pl.BlockSpec((tile, width), lambda i: (i, 0)),
        ),
        compiler_params=pltpu.CompilerParams(
            dimension_semantics=("parallel",),
            vmem_limit_bytes=VMEM_LIMIT_BYTES,
        ),
        cost_estimate=pl.CostEstimate(
            flops=2 * n,
            transcendentals=n,
            bytes_accessed=2 * n * itemsize,
        ),
    )(x2d)

    return out2d.reshape(orig_shape)   # free: contiguous bitcast


if __name__ == "__main__":
    key = jax.random.PRNGKey(0)
    k1, k2, k3 = jax.random.split(key, 3)

    # 1) Module-scale NCHW-style activation (tiny -> fused jnp fast path).
    x_small = jax.random.normal(k1, (2, 4, 16, 16), dtype=jnp.float32)
    y_small = jax.block_until_ready(xtanh_act(x_small, coef_x=1.0, coef_tanh=1.0))
    y_small_ref = 1.0 * jnp.tanh(x_small) + 1.0 * x_small
    assert y_small.shape == x_small.shape and y_small.dtype == x_small.dtype
    assert jnp.allclose(y_small, y_small_ref, atol=1e-6, rtol=1e-6)

    # 2) Larger aligned activation -> exercises the Pallas kernel path.
    x_big = jax.random.normal(k2, (128, 1024), dtype=jnp.float32)
    y_big = jax.block_until_ready(xtanh_act(x_big, coef_x=0.5, coef_tanh=2.0))
    y_big_ref = 2.0 * jnp.tanh(x_big) + 0.5 * x_big
    assert jnp.allclose(y_big, y_big_ref, atol=1e-5, rtol=1e-5)

    # 3) Misaligned odd size -> roofline jnp fallback (no pad/slice copies).
    x_odd = jax.random.normal(k3, (3, 5, 7), dtype=jnp.float32)
    y_odd = jax.block_until_ready(xtanh_act(x_odd, coef_x=0.5, coef_tanh=2.0))
    y_odd_ref = 2.0 * jnp.tanh(x_odd) + 0.5 * x_odd
    assert jnp.allclose(y_odd, y_odd_ref, atol=1e-6, rtol=1e-6)

    print("KERNEL_OK")
</pallas_src>

<mosaic_0001>
module attributes {stable_mosaic.version = 11 : i64} {
  func.func @_xtanh_kernel(%arg0: i32, %arg1: memref<8x8192xf32, #tpu.memory_space<vmem>>, %arg2: memref<8x8192xf32, #tpu.memory_space<vmem>>) attributes {dimension_semantics = [#tpu.dimension_semantics<parallel>], iteration_bounds = array<i64: 2>, scalar_prefetch = 0 : i64, scratch_operands = 0 : i64, tpu.core_type = #tpu.core_type<tc>, window_params = [{transform_indices = @transform_0, window_bounds = array<i64: 8, 8192>}, {transform_indices = @transform_1, window_bounds = array<i64: 8, 8192>}]} {
    %c0 = arith.constant 0 : index
    %c0_0 = arith.constant 0 : index
    %0 = vector.load %arg1[%c0, %c0_0] : memref<8x8192xf32, #tpu.memory_space<vmem>>, vector<8x8192xf32>
    %1 = math.tanh %0 : vector<8x8192xf32>
    %cst = arith.constant 2.000000e+00 : f32
    %2 = vector.broadcast %cst : f32 to vector<8x8192xf32>
    %3 = arith.mulf %1, %2 : vector<8x8192xf32>
    %cst_1 = arith.constant 5.000000e-01 : f32
    %4 = vector.broadcast %cst_1 : f32 to vector<8x8192xf32>
    %5 = arith.mulf %0, %4 : vector<8x8192xf32>
    %6 = arith.addf %3, %5 : vector<8x8192xf32>
    %c0_2 = arith.constant 0 : index
    %c0_3 = arith.constant 0 : index
    %7 = vector.load %arg2[%c0_2, %c0_3] : memref<8x8192xf32, #tpu.memory_space<vmem>>, vector<8x8192xf32>
    tpu.vector_store %arg2[%c0_2, %c0_3], %6 {strides = array<i32>} : memref<8x8192xf32, #tpu.memory_space<vmem>>, vector<8x8192xf32>,
    return
  }
  func.func @transform_0(%arg0: i32) -> (i32, i32) {
    %c0_i32 = arith.constant 0 : i32
    %c0_i32_0 = arith.constant 0 : i32
    return %arg0, %c0_i32 : i32, i32
  }
  func.func @transform_1(%arg0: i32) -> (i32, i32) {
    %c0_i32 = arith.constant 0 : i32
    %c0_i32_0 = arith.constant 0 : i32
    return %arg0, %c0_i32 : i32, i32
  }
}

</mosaic_0001>

<llo_original>
// kernel: tpu_custom_call.1
$region0: #{tpu_custom_call.1}
  #allocation0 [shape = 'u32[]', space=smem, size = 0x4, offset = 0x4, fixed_abs, tag = 'smem constant byte address 0x4 - core index']
  #allocation1 [shape = 'u32[144,128]{1,0:T(1,128)}', space=vmem, size = 0x12000, scoped, tag = 'internal scratch']
  %s0 = inlined_call_operand.hbm [shape: f32[16,8192], index: 0, kind: input, shape index: {}]
  %s1 = inlined_call_operand.hbm [shape: f32[16,8192], index: 1, kind: output, shape index: {}]
  %s2 = sld [smem:[#allocation0]]
  $region41: #{tpu_custom_call.1} parent=0
    _
  %s4 = ssub.s32 1, %s2
  %s5 = scalar_select 0, %s4, %s2
  $region1: #{tpu_custom_call.1} parent=0
    #allocation2 [shape = 'u8[524288]{0}', space=vmem, size = 0x80000, scoped, tag = 'input window, operand 0']
    #allocation3 [shape = 's32[2]{0}', space=sflag, size = 0x8, scoped, tag = 'scoped memory for tpu_custom_call.1']
    #allocation4 [shape = 's32[2]{0}', space=sflag, size = 0x8, scoped, tag = 'scoped memory for tpu_custom_call.1']
    #allocation5 [shape = 'u8[524288]{0}', space=vmem, size = 0x80000, scoped, tag = 'output window, operand 0']
    %6 = vsyncpa [#allocation3], 0
    %s7 = scalar_lea.sflag [#allocation3], 1
    %8 = vsyncpa %s7, 0
    %9 = vsyncpa [#allocation4], 0
    %s10 = scalar_lea.sflag [#allocation4], 1
    %11 = vsyncpa %s10, 0
    loop: start=0, step=1, limit=4
    $region2: #{tpu_custom_call.1} parent=1 // loop_pre_header
      _
    $region3: #{tpu_custom_call.1} parent=1 // loop_header
      %s13 = sphi 0, %s17
      %p14 = scmp.ge.s32.totalorder %s13, 4
      %s23 = sphi 0, %s25
      %s26 = sphi 0, %s23
      %s27 = sphi 0, %s26
      %s43 = sphi 0, %s27
      %s49 = sphi 0, %s51
      %s52 = sphi 0, %s49
      %s53 = sphi 0, %s52
      %s69 = sphi 0, %s53
    $region4: #{tpu_custom_call.1} parent=1 // loop_header_branch
      %16 = sbr.rel (%p14) target = $region8
    $region5: #{tpu_custom_call.1} parent=1 // loop_body
      %s18 = ssub.s32 %s13, 1
      %s19 = ssub.s32 %s13, 2
      %s20 = sadd.s32 %s13, 1
      %s21 = ssub.s32 %s13, %s20
      %p22 = scmp.eq.s32.totalorder %s21, 0
      %s24 = sadd.s32 %s23, 1
      %s25 = scalar_select %p22, %s23, %s24
      %p28 = pneg %p22
      %p29 = scmp.eq.s32.totalorder %s13, 1
      %p30 = por %p28, %p29
      %p31 = scmp.ne.s32.totalorder %s23, %s26
      %p32 = scmp.eq.s32.totalorder %s13, 0
      %p33 = por %p31, %p32
      %p34 = scmp.ne.s32.totalorder %s23, %s26
      %p35 = scmp.eq.s32.totalorder %s18, 1
      %p36 = por %p34, %p35
      %p37 = scmp.ne.s32.totalorder %s26, %s27
      %p38 = scmp.eq.s32.totalorder %s18, 0
      %p39 = por %p37, %p38
      %p40 = scmp.ne.s32.totalorder %s26, %s27
      %p41 = scmp.eq.s32.totalorder %s19, 1
      %p42 = por %p40, %p41
      %p44 = scmp.ne.s32.totalorder %s27, %s43
      %p45 = scmp.eq.s32.totalorder %s19, 0
      %p46 = por %p44, %p45
      %s47 = ssub.s32 %s13, %s20
      %p48 = scmp.eq.s32.totalorder %s47, 0
      %s50 = sadd.s32 %s49, 1
      %s51 = scalar_select %p48, %s49, %s50
      %p54 = pneg %p48
      %p55 = scmp.eq.s32.totalorder %s13, 1
      %p56 = por %p54, %p55
      %p57 = scmp.ne.s32.totalorder %s49, %s52
      %p58 = scmp.eq.s32.totalorder %s13, 0
      %p59 = por %p57, %p58
      %p60 = scmp.ne.s32.totalorder %s49, %s52
      %p61 = scmp.eq.s32.totalorder %s18, 1
      %p62 = por %p60, %p61
      %p63 = scmp.ne.s32.totalorder %s52, %s53
      %p64 = scmp.eq.s32.totalorder %s18, 0
      %p65 = por %p63, %p64
      %p66 = scmp.ne.s32.totalorder %s52, %s53
      %p67 = scmp.eq.s32.totalorder %s19, 1
      %p68 = por %p66, %p67
      %p70 = scmp.ne.s32.totalorder %s53, %s69
      %p71 = scmp.eq.s32.totalorder %s19, 0
      %p72 = por %p70, %p71
      %p73 = scmp.le.s32.totalorder 1, %s13
      %p74 = scmp.lt.s32.totalorder %s13, 3
      %p75 = pnand %p73, %p74
      %p76 = pneg %p75
      // Predicated region
      $region9: #{tpu_custom_call.1} parent=5 // pred_check
        _
      $region10: #{tpu_custom_call.1} parent=5 // pred_check_branch
        %78 = sbr.rel (%p75) target = $region12
      $region11: #{tpu_custom_call.1} parent=5 // pred_region
        %s79 = ssub.s32 %s13, 1
      $region12: #{tpu_custom_call.1} parent=5 // pred_fallthru
        _
      %p80 = scmp.lt.s32.totalorder %s13, 2
      // Predicated region
      $region13: #{tpu_custom_call.1} parent=5 // pred_check
        %p81 = pneg %p80
      $region14: #{tpu_custom_call.1} parent=5 // pred_check_branch
        %83 = sbr.rel (%p81) target = $region16
      $region15: #{tpu_custom_call.1} parent=5 // pred_region
        // Predicated region
        $region17: #{tpu_custom_call.1} parent=15 // pred_check
          %p84 = pneg %p33
        $region18: #{tpu_custom_call.1} parent=15 // pred_check_branch
          %86 = sbr.rel (%p84) target = $region20
        $region19: #{tpu_custom_call.1} parent=15 // pred_region
          %s87 = sand.u32 %s23, 1
          %s88 = scalar_lea.sflag [#allocation3], %s87
          %s89 = sand.u32 %s23, 1
          %s90 = smul.addr %s89, 512
          %s91 = scalar_lea.vmem [#allocation2], %s90
          %s93 = ssub.s32 8192, 8192
          %94 = vsyncadd %s88, %s93
          %s95 = smul.addr %s13, 64
          %s96 = smul.addr %s95, 128
          %s97 = scalar_lea.hbm %s0, %s96
          %s99 = sshll.u32 %s91, 4
          %s100 = int_to_ptr.vmem [resolvable:$true] %s99
          %102 = dma.hbm_to_vmem [thread:$0]  %s97, 8192, %s100, %s88
        $region20: #{tpu_custom_call.1} parent=15 // pred_fallthru
          _
      $region16: #{tpu_custom_call.1} parent=5 // pred_fallthru
        _
      %p103 = scmp.le.s32.totalorder 1, %s13
      %p104 = scmp.lt.s32.totalorder %s13, 3
      %p105 = pnand %p103, %p104
      %p106 = pneg %p105
      // Predicated region
      $region21: #{tpu_custom_call.1} parent=5 // pred_check
        _
      $region22: #{tpu_custom_call.1} parent=5 // pred_check_branch
        %108 = sbr.rel (%p105) target = $region24
      $region23: #{tpu_custom_call.1} parent=5 // pred_region
        %s109 = ssub.s32 %s13, 1
        %s110 = sand.u32 %s26, 1
        %s111 = scalar_lea.sflag [#allocation3], %s110
        %s112 = sand.u32 %s26, 1
        %s113 = smul.addr %s112, 512
        %s114 = scalar_lea.vmem [#allocation2], %s113
        // Predicated region
        $region25: #{tpu_custom_call.1} parent=23 // pred_check
          %p115 = pneg %p39
        $region26: #{tpu_custom_call.1} parent=23 // pred_check_branch
          %117 = sbr.rel (%p115) target = $region28
        $region27: #{tpu_custom_call.1} parent=23 // pred_region
          %118 = dma.done %s111, 8192
        $region28: #{tpu_custom_call.1} parent=23 // pred_fallthru
          _
        %s119 = sand.u32 %s26, 1
        %s120 = scalar_lea.sflag [#allocation3], %s119
        %s121 = sand.u32 %s26, 1
        %s122 = smul.addr %s121, 512
        %s123 = scalar_lea.vmem [#allocation2], %s122
        %p124 = pneg %p39
        %p125 = pneg %p36
        %p126 = pneg %p65
        %p127 = pneg %p62
        %s128 = sand.u32 %s52, 1
        %s129 = scalar_lea.sflag [#allocation4], %s128
        %s130 = sand.u32 %s52, 1
        %s131 = smul.addr %s130, 512
        %s132 = scalar_lea.vmem [#allocation5], %s131
        %v133 = vld [vmem:[%s114] sm:$0xff]
        %v134 = vld [vmem:[%s114 + $0x8] sm:$0xff]
        %v135 = vld [vmem:[%s114 + $0x10] sm:$0xff]
        %v136 = vld [vmem:[%s114 + $0x18] sm:$0xff]
        %v137 = vld [vmem:[%s114 + $0x20] sm:$0xff]
        %v138 = vld [vmem:[%s114 + $0x28] sm:$0xff]
        %v139 = vld [vmem:[%s114 + $0x30] sm:$0xff]
        %v140 = vld [vmem:[%s114 + $0x38] sm:$0xff]
        %v141 = vld [vmem:[%s114 + $0x40] sm:$0xff]
        %v142 = vld [vmem:[%s114 + $0x48] sm:$0xff]
        %v143 = vld [vmem:[%s114 + $0x50] sm:$0xff]
        %v144 = vld [vmem:[%s114 + $0x58] sm:$0xff]
        %v145 = vld [vmem:[%s114 + $0x60] sm:$0xff]
        %v146 = vld [vmem:[%s114 + $0x68] sm:$0xff]
        %v147 = vld [vmem:[%s114 + $0x70] sm:$0xff]
        %v148 = vld [vmem:[%s114 + $0x78] sm:$0xff]
        %v149 = vld [vmem:[%s114 + $0x80] sm:$0xff]
        %v150 = vld [vmem:[%s114 + $0x88] sm:$0xff]
        %v151 = vld [vmem:[%s114 + $0x90] sm:$0xff]
        %v152 = vld [vmem:[%s114 + $0x98] sm:$0xff]
        %v153 = vld [vmem:[%s114 + $0xa0] sm:$0xff]
        %v154 = vld [vmem:[%s114 + $0xa8] sm:$0xff]
        %v155 = vld [vmem:[%s114 + $0xb0] sm:$0xff]
        %v156 = vld [vmem:[%s114 + $0xb8] sm:$0xff]
        %v157 = vld [vmem:[%s114 + $0xc0] sm:$0xff]
        %v158 = vld [vmem:[%s114 + $0xc8] sm:$0xff]
        %v159 = vld [vmem:[%s114 + $0xd0] sm:$0xff]
        %v160 = vld [vmem:[%s114 + $0xd8] sm:$0xff]
        %v161 = vld [vmem:[%s114 + $0xe0] sm:$0xff]
        %v162 = vld [vmem:[%s114 + $0xe8] sm:$0xff]
        %v163 = vld [vmem:[%s114 + $0xf0] sm:$0xff]
        %v164 = vld [vmem:[%s114 + $0xf8] sm:$0xff]
        %v165 = vld [vmem:[%s114 + $0x100] sm:$0xff]
        %v166 = vld [vmem:[%s114 + $0x108] sm:$0xff]
        %v167 = vld [vmem:[%s114 + $0x110] sm:$0xff]
        %v168 = vld [vmem:[%s114 + $0x118] sm:$0xff]
        %v169 = vld [vmem:[%s114 + $0x120] sm:$0xff]
        %v170 = vld [vmem:[%s114 + $0x128] sm:$0xff]
        %v171 = vld [vmem:[%s114 + $0x130] sm:$0xff]
        %v172 = vld [vmem:[%s114 + $0x138] sm:$0xff]
        %v173 = vld [vmem:[%s114 + $0x140] sm:$0xff]
        %v174 = vld [vmem:[%s114 + $0x148] sm:$0xff]
        %v175 = vld [vmem:[%s114 + $0x150] sm:$0xff]
        %v176 = vld [vmem:[%s114 + $0x158] sm:$0xff]
        %v177 = vld [vmem:[%s114 + $0x160] sm:$0xff]
        %v178 = vld [vmem:[%s114 + $0x168] sm:$0xff]
        %v179 = vld [vmem:[%s114 + $0x170] sm:$0xff]
        %v180 = vld [vmem:[%s114 + $0x178] sm:$0xff]
        %v181 = vld [vmem:[%s114 + $0x180] sm:$0xff]
        %v182 = vld [vmem:[%s114 + $0x188] sm:$0xff]
        %v183 = vld [vmem:[%s114 + $0x190] sm:$0xff]
        %v184 = vld [vmem:[%s114 + $0x198] sm:$0xff]
        %v185 = vld [vmem:[%s114 + $0x1a0] sm:$0xff]
        %v186 = vld [vmem:[%s114 + $0x1a8] sm:$0xff]
        %v187 = vld [vmem:[%s114 + $0x1b0] sm:$0xff]
        %v188 = vld [vmem:[%s114 + $0x1b8] sm:$0xff]
        %v189 = vld [vmem:[%s114 + $0x1c0] sm:$0xff]
        %v190 = vld [vmem:[%s114 + $0x1c8] sm:$0xff]
        %v191 = vld [vmem:[%s114 + $0x1d0] sm:$0xff]
        %v192 = vld [vmem:[%s114 + $0x1d8] sm:$0xff]
        %v193 = vld [vmem:[%s114 + $0x1e0] sm:$0xff]
        %v194 = vld [vmem:[%s114 + $0x1e8] sm:$0xff]
        %v195 = vld [vmem:[%s114 + $0x1f0] sm:$0xff]
        %v196 = vld [vmem:[%s114 + $0x1f8] sm:$0xff]
        %v197 = vtanh.pop %v133
        %v198 = vtanh.pop %v134
        %v199 = vtanh.pop %v135
        %v200 = vtanh.pop %v136
        %v201 = vtanh.pop %v137
        %v202 = vtanh.pop %v138
        %v203 = vtanh.pop %v139
        %v204 = vtanh.pop %v140
        %v205 = vtanh.pop %v141
        %v206 = vtanh.pop %v142
        %v207 = vtanh.pop %v143
        %v208 = vtanh.pop %v144
        %v209 = vtanh.pop %v145
        %v210 = vtanh.pop %v146
        %v211 = vtanh.pop %v147
        %v212 = vtanh.pop %v148
        %v213 = vtanh.pop %v149
        %v214 = vtanh.pop %v150
        %v215 = vtanh.pop %v151
        %v216 = vtanh.pop %v152
        %v217 = vtanh.pop %v153
        %v218 = vtanh.pop %v154
        %v219 = vtanh.pop %v155
        %v220 = vtanh.pop %v156
        %v221 = vtanh.pop %v157
        %v222 = vtanh.pop %v158
        %v223 = vtanh.pop %v159
        %v224 = vtanh.pop %v160
        %v225 = vtanh.pop %v161
        %v226 = vtanh.pop %v162
        %v227 = vtanh.pop %v163
        %v228 = vtanh.pop %v164
        %v229 = vtanh.pop %v165
        %v230 = vtanh.pop %v166
        %v231 = vtanh.pop %v167
        %v232 = vtanh.pop %v168
        %v233 = vtanh.pop %v169
        %v234 = vtanh.pop %v170
        %v235 = vtanh.pop %v171
        %v236 = vtanh.pop %v172
        %v237 = vtanh.pop %v173
        %v238 = vtanh.pop %v174
        %v239 = vtanh.pop %v175
        %v240 = vtanh.pop %v176
        %v241 = vtanh.pop %v177
        %v242 = vtanh.pop %v178
        %v243 = vtanh.pop %v179
        %v244 = vtanh.pop %v180
        %v245 = vtanh.pop %v181
        %v246 = vtanh.pop %v182
        %v247 = vtanh.pop %v183
        %v248 = vtanh.pop %v184
        %v249 = vtanh.pop %v185
        %v250 = vtanh.pop %v186
        %v251 = vtanh.pop %v187
        %v252 = vtanh.pop %v188
        %v253 = vtanh.pop %v189
        %v254 = vtanh.pop %v190
        %v255 = vtanh.pop %v191
        %v256 = vtanh.pop %v192
        %v257 = vtanh.pop %v193
        %v258 = vtanh.pop %v194
        %v259 = vtanh.pop %v195
        %v260 = vtanh.pop %v196
        %v261 = vmul.f32 %v197, 2.0
        %v262 = vmul.f32 %v198, 2.0
        %v263 = vmul.f32 %v199, 2.0
        %v264 = vmul.f32 %v200, 2.0
        %v265 = vmul.f32 %v201, 2.0
        %v266 = vmul.f32 %v202, 2.0
        %v267 = vmul.f32 %v203, 2.0
        %v268 = vmul.f32 %v204, 2.0
        %v269 = vmul.f32 %v205, 2.0
        %v270 = vmul.f32 %v206, 2.0
        %v271 = vmul.f32 %v207, 2.0
        %v272 = vmul.f32 %v208, 2.0
        %v273 = vmul.f32 %v209, 2.0
        %v274 = vmul.f32 %v210, 2.0
        %v275 = vmul.f32 %v211, 2.0
        %v276 = vmul.f32 %v212, 2.0
        %v277 = vmul.f32 %v213, 2.0
        %v278 = vmul.f32 %v214, 2.0
        %v279 = vmul.f32 %v215, 2.0
        %v280 = vmul.f32 %v216, 2.0
        %v281 = vmul.f32 %v217, 2.0
        %v282 = vmul.f32 %v218, 2.0
        %v283 = vmul.f32 %v219, 2.0
        %v284 = vmul.f32 %v220, 2.0
        %v285 = vmul.f32 %v221, 2.0
        %v286 = vmul.f32 %v222, 2.0
        %v287 = vmul.f32 %v223, 2.0
        %v288 = vmul.f32 %v224, 2.0
        %v289 = vmul.f32 %v225, 2.0
        %v290 = vmul.f32 %v226, 2.0
        %v291 = vmul.f32 %v227, 2.0
        %v292 = vmul.f32 %v228, 2.0
        %v293 = vmul.f32 %v229, 2.0
        %v294 = vmul.f32 %v230, 2.0
        %v295 = vmul.f32 %v231, 2.0
        %v296 = vmul.f32 %v232, 2.0
        %v297 = vmul.f32 %v233, 2.0
        %v298 = vmul.f32 %v234, 2.0
        %v299 = vmul.f32 %v235, 2.0
        %v300 = vmul.f32 %v236, 2.0
        %v301 = vmul.f32 %v237, 2.0
        %v302 = vmul.f32 %v238, 2.0
        %v303 = vmul.f32 %v239, 2.0
        %v304 = vmul.f32 %v240, 2.0
        %v305 = vmul.f32 %v241, 2.0
        %v306 = vmul.f32 %v242, 2.0
        %v307 = vmul.f32 %v243, 2.0
        %v308 = vmul.f32 %v244, 2.0
        %v309 = vmul.f32 %v245, 2.0
        %v310 = vmul.f32 %v246, 2.0
        %v311 = vmul.f32 %v247, 2.0
        %v312 = vmul.f32 %v248, 2.0
        %v313 = vmul.f32 %v249, 2.0
        %v314 = vmul.f32 %v250, 2.0
        %v315 = vmul.f32 %v251, 2.0
        %v316 = vmul.f32 %v252, 2.0
        %v317 = vmul.f32 %v253, 2.0
        %v318 = vmul.f32 %v254, 2.0
        %v319 = vmul.f32 %v255, 2.0
        %v320 = vmul.f32 %v256, 2.0
        %v321 = vmul.f32 %v257, 2.0
        %v322 = vmul.f32 %v258, 2.0
        %v323 = vmul.f32 %v259, 2.0
        %v324 = vmul.f32 %v260, 2.0
        %v325 = vmul.f32 %v133, 0.5
        %v326 = vmul.f32 %v134, 0.5
        %v327 = vmul.f32 %v135, 0.5
        %v328 = vmul.f32 %v136, 0.5
        %v329 = vmul.f32 %v137, 0.5
        %v330 = vmul.f32 %v138, 0.5
        %v331 = vmul.f32 %v139, 0.5
        %v332 = vmul.f32 %v140, 0.5
        %v333 = vmul.f32 %v141, 0.5
        %v334 = vmul.f32 %v142, 0.5
        %v335 = vmul.f32 %v143, 0.5
        %v336 = vmul.f32 %v144, 0.5
        %v337 = vmul.f32 %v145, 0.5
        %v338 = vmul.f32 %v146, 0.5
        %v339 = vmul.f32 %v147, 0.5
        %v340 = vmul.f32 %v148, 0.5
        %v341 = vmul.f32 %v149, 0.5
        %v342 = vmul.f32 %v150, 0.5
        %v343 = vmul.f32 %v151, 0.5
        %v344 = vmul.f32 %v152, 0.5
        %v345 = vmul.f32 %v153, 0.5
        %v346 = vmul.f32 %v154, 0.5
        %v347 = vmul.f32 %v155, 0.5
        %v348 = vmul.f32 %v156, 0.5
        %v349 = vmul.f32 %v157, 0.5
        %v350 = vmul.f32 %v158, 0.5
        %v351 = vmul.f32 %v159, 0.5
        %v352 = vmul.f32 %v160, 0.5
        %v353 = vmul.f32 %v161, 0.5
        %v354 = vmul.f32 %v162, 0.5
        %v355 = vmul.f32 %v163, 0.5
        %v356 = vmul.f32 %v164, 0.5
        %v357 = vmul.f32 %v165, 0.5
        %v358 = vmul.f32 %v166, 0.5
        %v359 = vmul.f32 %v167, 0.5
        %v360 = vmul.f32 %v168, 0.5
        %v361 = vmul.f32 %v169, 0.5
        %v362 = vmul.f32 %v170, 0.5
        %v363 = vmul.f32 %v171, 0.5
        %v364 = vmul.f32 %v172, 0.5
        %v365 = vmul.f32 %v173, 0.5
        %v366 = vmul.f32 %v174, 0.5
        %v367 = vmul.f32 %v175, 0.5
        %v368 = vmul.f32 %v176, 0.5
        %v369 = vmul.f32 %v177, 0.5
        %v370 = vmul.f32 %v178, 0.5
        %v371 = vmul.f32 %v179, 0.5
        %v372 = vmul.f32 %v180, 0.5
        %v373 = vmul.f32 %v181, 0.5
        %v374 = vmul.f32 %v182, 0.5
        %v375 = vmul.f32 %v183, 0.5
        %v376 = vmul.f32 %v184, 0.5
        %v377 = vmul.f32 %v185, 0.5
        %v378 = vmul.f32 %v186, 0.5
        %v379 = vmul.f32 %v187, 0.5
        %v380 = vmul.f32 %v188, 0.5
        %v381 = vmul.f32 %v189, 0.5
        %v382 = vmul.f32 %v190, 0.5
        %v383 = vmul.f32 %v191, 0.5
        %v384 = vmul.f32 %v192, 0.5
        %v385 = vmul.f32 %v193, 0.5
        %v386 = vmul.f32 %v194, 0.5
        %v387 = vmul.f32 %v195, 0.5
        %v388 = vmul.f32 %v196, 0.5
        %v389 = vadd.f32 %v261, %v325
        %v390 = vadd.f32 %v262, %v326
        %v391 = vadd.f32 %v263, %v327
        %v392 = vadd.f32 %v264, %v328
        %v393 = vadd.f32 %v265, %v329
        %v394 = vadd.f32 %v266, %v330
        %v395 = vadd.f32 %v267, %v331
        %v396 = vadd.f32 %v268, %v332
        %v397 = vadd.f32 %v269, %v333
        %v398 = vadd.f32 %v270, %v334
        %v399 = vadd.f32 %v271, %v335
        %v400 = vadd.f32 %v272, %v336
        %v401 = vadd.f32 %v273, %v337
        %v402 = vadd.f32 %v274, %v338
        %v403 = vadd.f32 %v275, %v339
        %v404 = vadd.f32 %v276, %v340
        %v405 = vadd.f32 %v277, %v341
        %v406 = vadd.f32 %v278, %v342
        %v407 = vadd.f32 %v279, %v343
        %v408 = vadd.f32 %v280, %v344
        %v409 = vadd.f32 %v281, %v345
        %v410 = vadd.f32 %v282, %v346
        %v411 = vadd.f32 %v283, %v347
        %v412 = vadd.f32 %v284, %v348
        %v413 = vadd.f32 %v285, %v349
        %v414 = vadd.f32 %v286, %v350
        %v415 = vadd.f32 %v287, %v351
        %v416 = vadd.f32 %v288, %v352
        %v417 = vadd.f32 %v289, %v353
        %v418 = vadd.f32 %v290, %v354
        %v419 = vadd.f32 %v291, %v355
        %v420 = vadd.f32 %v292, %v356
        %v421 = vadd.f32 %v293, %v357
        %v422 = vadd.f32 %v294, %v358
        %v423 = vadd.f32 %v295, %v359
        %v424 = vadd.f32 %v296, %v360
        %v425 = vadd.f32 %v297, %v361
        %v426 = vadd.f32 %v298, %v362
        %v427 = vadd.f32 %v299, %v363
        %v428 = vadd.f32 %v300, %v364
        %v429 = vadd.f32 %v301, %v365
        %v430 = vadd.f32 %v302, %v366
        %v431 = vadd.f32 %v303, %v367
        %v432 = vadd.f32 %v304, %v368
        %v433 = vadd.f32 %v305, %v369
        %v434 = vadd.f32 %v306, %v370
        %v435 = vadd.f32 %v307, %v371
        %v436 = vadd.f32 %v308, %v372
        %v437 = vadd.f32 %v309, %v373
        %v438 = vadd.f32 %v310, %v374
        %v439 = vadd.f32 %v311, %v375
        %v440 = vadd.f32 %v312, %v376
        %v441 = vadd.f32 %v313, %v377
        %v442 = vadd.f32 %v314, %v378
        %v443 = vadd.f32 %v315, %v379
        %v444 = vadd.f32 %v316, %v380
        %v445 = vadd.f32 %v317, %v381
        %v446 = vadd.f32 %v318, %v382
        %v447 = vadd.f32 %v319, %v383
        %v448 = vadd.f32 %v320, %v384
        %v449 = vadd.f32 %v321, %v385
        %v450 = vadd.f32 %v322, %v386
        %v451 = vadd.f32 %v323, %v387
        %v452 = vadd.f32 %v324, %v388
        %453 = vst [vmem:[%s132] sm:$0xff] %v389
        %454 = vst [vmem:[%s132 + $0x8] sm:$0xff] %v390
        %455 = vst [vmem:[%s132 + $0x10] sm:$0xff] %v391
        %456 = vst [vmem:[%s132 + $0x18] sm:$0xff] %v392
        %457 = vst [vmem:[%s132 + $0x20] sm:$0xff] %v393
        %458 = vst [vmem:[%s132 + $0x28] sm:$0xff] %v394
        %459 = vst [vmem:[%s132 + $0x30] sm:$0xff] %v395
        %460 = vst [vmem:[%s132 + $0x38] sm:$0xff] %v396
        %461 = vst [vmem:[%s132 + $0x40] sm:$0xff] %v397
        %462 = vst [vmem:[%s132 + $0x48] sm:$0xff] %v398
        %463 = vst [vmem:[%s132 + $0x50] sm:$0xff] %v399
        %464 = vst [vmem:[%s132 + $0x58] sm:$0xff] %v400
        %465 = vst [vmem:[%s132 + $0x60] sm:$0xff] %v401
        %466 = vst [vmem:[%s132 + $0x68] sm:$0xff] %v402
        %467 = vst [vmem:[%s132 + $0x70] sm:$0xff] %v403
        %468 = vst [vmem:[%s132 + $0x78] sm:$0xff] %v404
        %469 = vst [vmem:[%s132 + $0x80] sm:$0xff] %v405
        %470 = vst [vmem:[%s132 + $0x88] sm:$0xff] %v406
        %471 = vst [vmem:[%s132 + $0x90] sm:$0xff] %v407
        %472 = vst [vmem:[%s132 + $0x98] sm:$0xff] %v408
        %473 = vst [vmem:[%s132 + $0xa0] sm:$0xff] %v409
        %474 = vst [vmem:[%s132 + $0xa8] sm:$0xff] %v410
        %475 = vst [vmem:[%s132 + $0xb0] sm:$0xff] %v411
        %476 = vst [vmem:[%s132 + $0xb8] sm:$0xff] %v412
        %477 = vst [vmem:[%s132 + $0xc0] sm:$0xff] %v413
        %478 = vst [vmem:[%s132 + $0xc8] sm:$0xff] %v414
        %479 = vst [vmem:[%s132 + $0xd0] sm:$0xff] %v415
        %480 = vst [vmem:[%s132 + $0xd8] sm:$0xff] %v416
        %481 = vst [vmem:[%s132 + $0xe0] sm:$0xff] %v417
        %482 = vst [vmem:[%s132 + $0xe8] sm:$0xff] %v418
        %483 = vst [vmem:[%s132 + $0xf0] sm:$0xff] %v419
        %484 = vst [vmem:[%s132 + $0xf8] sm:$0xff] %v420
        %485 = vst [vmem:[%s132 + $0x100] sm:$0xff] %v421
        %486 = vst [vmem:[%s132 + $0x108] sm:$0xff] %v422
        %487 = vst [vmem:[%s132 + $0x110] sm:$0xff] %v423
        %488 = vst [vmem:[%s132 + $0x118] sm:$0xff] %v424
        %489 = vst [vmem:[%s132 + $0x120] sm:$0xff] %v425
        %490 = vst [vmem:[%s132 + $0x128] sm:$0xff] %v426
        %491 = vst [vmem:[%s132 + $0x130] sm:$0xff] %v427
        %492 = vst [vmem:[%s132 + $0x138] sm:$0xff] %v428
        %493 = vst [vmem:[%s132 + $0x140] sm:$0xff] %v429
        %494 = vst [vmem:[%s132 + $0x148] sm:$0xff] %v430
        %495 = vst [vmem:[%s132 + $0x150] sm:$0xff] %v431
        %496 = vst [vmem:[%s132 + $0x158] sm:$0xff] %v432
        %497 = vst [vmem:[%s132 + $0x160] sm:$0xff] %v433
        %498 = vst [vmem:[%s132 + $0x168] sm:$0xff] %v434
        %499 = vst [vmem:[%s132 + $0x170] sm:$0xff] %v435
        %500 = vst [vmem:[%s132 + $0x178] sm:$0xff] %v436
        %501 = vst [vmem:[%s132 + $0x180] sm:$0xff] %v437
        %502 = vst [vmem:[%s132 + $0x188] sm:$0xff] %v438
        %503 = vst [vmem:[%s132 + $0x190] sm:$0xff] %v439
        %504 = vst [vmem:[%s132 + $0x198] sm:$0xff] %v440
        %505 = vst [vmem:[%s132 + $0x1a0] sm:$0xff] %v441
        %506 = vst [vmem:[%s132 + $0x1a8] sm:$0xff] %v442
        %507 = vst [vmem:[%s132 + $0x1b0] sm:$0xff] %v443
        %508 = vst [vmem:[%s132 + $0x1b8] sm:$0xff] %v444
        %509 = vst [vmem:[%s132 + $0x1c0] sm:$0xff] %v445
        %510 = vst [vmem:[%s132 + $0x1c8] sm:$0xff] %v446
        %511 = vst [vmem:[%s132 + $0x1d0] sm:$0xff] %v447
        %512 = vst [vmem:[%s132 + $0x1d8] sm:$0xff] %v448
        %513 = vst [vmem:[%s132 + $0x1e0] sm:$0xff] %v449
        %514 = vst [vmem:[%s132 + $0x1e8] sm:$0xff] %v450
        %515 = vst [vmem:[%s132 + $0x1f0] sm:$0xff] %v451
        %516 = vst [vmem:[%s132 + $0x1f8] sm:$0xff] %v452
        %s517 = sand.u32 %s52, 1
        %s518 = scalar_lea.sflag [#allocation4], %s517
        %s519 = sand.u32 %s52, 1
        %s520 = smul.addr %s519, 512
        %s521 = scalar_lea.vmem [#allocation5], %s520
        // Predicated region
        $region29: #{tpu_custom_call.1} parent=23 // pred_check
          %p522 = pneg %p62
        $region30: #{tpu_custom_call.1} parent=23 // pred_check_branch
          %524 = sbr.rel (%p522) target = $region32
        $region31: #{tpu_custom_call.1} parent=23 // pred_region
          %s526 = ssub.s32 8192, 8192
          %527 = vsyncadd %s518, %s526
          %s528 = smul.addr %s18, 64
          %s529 = smul.addr %s528, 128
          %s530 = scalar_lea.hbm %s1, %s529
          %s532 = sshll.u32 %s521, 4
          %s533 = int_to_ptr.vmem [resolvable:$true] %s532
          %535 = dma.vmem_to_hbm [thread:$0]  %s533, 8192, %s530, %s518
        $region32: #{tpu_custom_call.1} parent=23 // pred_fallthru
          _
      $region24: #{tpu_custom_call.1} parent=5 // pred_fallthru
        _
      %p536 = scmp.le.s32.totalorder 2, %s13
      // Predicated region
      $region33: #{tpu_custom_call.1} parent=5 // pred_check
        %p537 = pneg %p536
      $region34: #{tpu_custom_call.1} parent=5 // pred_check_branch
        %539 = sbr.rel (%p537) target = $region36
      $region35: #{tpu_custom_call.1} parent=5 // pred_region
        %s540 = ssub.s32 %s13, 2
        // Predicated region
        $region37: #{tpu_custom_call.1} parent=35 // pred_check
          %p541 = pneg %p68
        $region38: #{tpu_custom_call.1} parent=35 // pred_check_branch
          %543 = sbr.rel (%p541) target = $region40
        $region39: #{tpu_custom_call.1} parent=35 // pred_region
          %s544 = sand.u32 %s53, 1
          %s545 = scalar_lea.sflag [#allocation4], %s544
          %s546 = sand.u32 %s53, 1
          %s547 = smul.addr %s546, 512
          %s548 = scalar_lea.vmem [#allocation5], %s547
          %549 = dma.done %s545, 8192
        $region40: #{tpu_custom_call.1} parent=35 // pred_fallthru
          _
      $region36: #{tpu_custom_call.1} parent=5 // pred_fallthru
        _
    $region6: #{tpu_custom_call.1} parent=1 // loop_footer
      %s17 = sadd.s32 1, %s13
    $region7: #{tpu_custom_call.1} parent=1 // loop_footer_branch
      %12 = sbr.rel target = $region3
    $region8: #{tpu_custom_call.1} parent=1 // loop_exit
      _
    %550 = vsyncpa [#allocation3], 1
    %s551 = scalar_lea.sflag [#allocation3], 1
    %552 = vsyncpa %s551, 1
    %553 = vsyncpa [#allocation4], 1
    %s554 = scalar_lea.sflag [#allocation4], 1
    %555 = vsyncpa %s554, 1

</llo_original>
